<compile_context>
chip_gen: v7x
topology: tpu7x:2x2x1
jax: 0.10.0
libtpu: 0.0.40
codegen_flags: <defaults>
</compile_context>

<pallas_src>
import jax
import jax.numpy as jnp
from jax.experimental import pallas as pl
from jax.experimental.pallas import tpu as pltpu

_LANE = 128
_SUBLANE = 8
# ~2 MiB per block: with input + output each double-buffered (~4x resident),
# this is ~8 MiB of VMEM -- safe on v5e (16 MiB scoped), v6e and v7x.
_TARGET_BLOCK_BYTES = 2 * 1024 * 1024


def _identity_kernel(x_ref, o_ref):
    # Straight VMEM copy of the whole tile (full-width vld/vst).
    o_ref[...] = x_ref[...]


def _copy_2d(x2d: jax.Array, block_rows: int, grid_rows: int) -> jax.Array:
    rows, width = x2d.shape
    return pl.pallas_call(
        _identity_kernel,
        out_shape=jax.ShapeDtypeStruct((rows, width), x2d.dtype),
        grid_spec=pltpu.PrefetchScalarGridSpec(
            num_scalar_prefetch=0,
            grid=(grid_rows,),
            in_specs=[pl.BlockSpec((block_rows, width), lambda i: (i, 0))],
            out_specs=pl.BlockSpec((block_rows, width), lambda i: (i, 0)),
        ),
        # Output aliases the input HBM buffer: identity needs no new buffer.
        input_output_aliases={0: 0},
        compiler_params=pltpu.CompilerParams(
            dimension_semantics=("parallel",),  # megacore sharding on v7x
        ),
    )(x2d)


@jax.jit
def identity(x: jax.Array) -> jax.Array:
    """Pallas identity: returns an array equal to x (same shape & dtype)."""
    orig_shape = x.shape
    n = x.size
    itemsize = jnp.dtype(x.dtype).itemsize
    min_tile = _SUBLANE * _LANE  # 1024 elements

    if n % min_tile == 0:
        # Common case: no pad, no slice. Wide lane-dense 2D view.
        width = _LANE
        for cand in (4096, 2048, 1024, 512, 256, 128):
            if n % cand == 0:
                width = cand
                break
        rows = n // width

        # Block sizing: big enough to amortize ~0.35 us per grid step, small
        # enough for every generation's VMEM budget.
        max_rows = max(
            _SUBLANE,
            (_TARGET_BLOCK_BYTES // (width * itemsize)) // _SUBLANE * _SUBLANE,
        )
        if rows <= max_rows:
            block_rows = rows          # whole slab in one grid step
            grid_rows = 1
        else:
            block_rows = max_rows      # multiple of 8; partial last block OK
            grid_rows = pl.cdiv(rows, block_rows)

        y2d = _copy_2d(x.reshape(rows, width), block_rows, grid_rows)
        return y2d.reshape(orig_shape)

    # Rare fallback (flat size not a multiple of 8*128): pad to a lane-dense
    # slab, copy, slice the valid prefix back out.
    n_pad = pl.cdiv(n, min_tile) * min_tile
    flat = jnp.pad(jnp.ravel(x), (0, n_pad - n))
    rows = n_pad // _LANE
    y2d = _copy_2d(flat.reshape(rows, _LANE), rows, 1)
    return y2d.reshape(-1)[:n].reshape(orig_shape)


if __name__ == "__main__":
    key = jax.random.PRNGKey(0)
    # NCHW input matching the detector's usage: batch=2, channels=4, 16x16.
    x = jax.random.normal(key, (2, 4, 16, 16), dtype=jnp.float32)

    y = identity(x)
    jax.block_until_ready(y)

    assert y.shape == x.shape and y.dtype == x.dtype
    assert bool(jnp.all(y == x))
    print("KERNEL_OK")
</pallas_src>

<mosaic_0001>
module attributes {stable_mosaic.version = 11 : i64} {
  func.func @_identity_kernel(%arg0: i32, %arg1: memref<1x2048xf32, #tpu.memory_space<vmem>>, %arg2: memref<1x2048xf32, #tpu.memory_space<vmem>>) attributes {dimension_semantics = [#tpu.dimension_semantics<parallel>], iteration_bounds = array<i64: 1>, scalar_prefetch = 0 : i64, scratch_operands = 0 : i64, tpu.core_type = #tpu.core_type<tc>, window_params = [{transform_indices = @transform_0, window_bounds = array<i64: 1, 2048>}, {transform_indices = @transform_1, window_bounds = array<i64: 1, 2048>}]} {
    %c0 = arith.constant 0 : index
    %c0_0 = arith.constant 0 : index
    %0 = vector.load %arg1[%c0, %c0_0] : memref<1x2048xf32, #tpu.memory_space<vmem>>, vector<1x2048xf32>
    %c0_1 = arith.constant 0 : index
    %c0_2 = arith.constant 0 : index
    %1 = vector.load %arg2[%c0_1, %c0_2] : memref<1x2048xf32, #tpu.memory_space<vmem>>, vector<1x2048xf32>
    tpu.vector_store %arg2[%c0_1, %c0_2], %0 {strides = array<i32>} : memref<1x2048xf32, #tpu.memory_space<vmem>>, vector<1x2048xf32>,
    return
  }
  func.func @transform_0(%arg0: i32) -> (i32, i32) {
    %c0_i32 = arith.constant 0 : i32
    %c0_i32_0 = arith.constant 0 : i32
    return %arg0, %c0_i32 : i32, i32
  }
  func.func @transform_1(%arg0: i32) -> (i32, i32) {
    %c0_i32 = arith.constant 0 : i32
    %c0_i32_0 = arith.constant 0 : i32
    return %arg0, %c0_i32 : i32, i32
  }
}

</mosaic_0001>

<llo_original>
// kernel: identity.1
$region0: #{identity.1}
  #allocation0 [shape = 'u32[]', space=smem, size = 0x4, offset = 0x4, fixed_abs, tag = 'smem constant byte address 0x4 - core index']
  #allocation1 [shape = 'u32[144,128]{1,0:T(1,128)}', space=vmem, size = 0x12000, scoped, tag = 'internal scratch']
  %s0 = inlined_call_operand.vmem [shape: f32[1,2048], index: 0, kind: input, shape index: {}, may-alias: {0,1}]
  %s1 = inlined_call_operand.vmem [shape: f32[1,2048], index: 1, kind: output, shape index: {}, may-alias: {0,1}]
  %s2 = sld [smem:[#allocation0]]
  $region14: #{identity.1} parent=0
    _
  %s4 = ssub.s32 1, %s2
  %s5 = scalar_select 0, %s4, %s2
  // Predicated region
  $region2: #{identity.1} parent=0 // pred_check
    _
  $region3: #{identity.1} parent=0 // pred_check_branch
    %7 = sbr.rel (0) target = $region5
  $region4: #{identity.1} parent=0 // pred_region
    _
  $region5: #{identity.1} parent=0 // pred_fallthru
    _
  %v8 = vld [vmem:[%s0] sm:$0xff]
  %v9 = vld [vmem:[%s0 + $0x8] sm:$0xff]
  %10 = vst [vmem:[%s1] sm:$0xff] %v8
  %11 = vst [vmem:[%s1 + $0x8] sm:$0xff] %v9
  // Predicated region
  $region6: #{identity.1} parent=0 // pred_check
    _
  $region7: #{identity.1} parent=0 // pred_check_branch
    %13 = sbr.rel (0) target = $region9
  $region8: #{identity.1} parent=0 // pred_region
    _
  $region9: #{identity.1} parent=0 // pred_fallthru
    _
  // Predicated region
  $region10: #{identity.1} parent=0 // pred_check
    _
  $region11: #{identity.1} parent=0 // pred_check_branch
    %15 = sbr.rel (0) target = $region13
  $region12: #{identity.1} parent=0 // pred_region
    _
  $region13: #{identity.1} parent=0 // pred_fallthru
    _

</llo_original>
